<compile_context>
chip_gen: v7x
topology: tpu7x:2x2x1
jax: 0.10.0
libtpu: 0.0.40
codegen_flags: <defaults>
</compile_context>

<pallas_src>
import jax
import jax.numpy as jnp
from jax.experimental import pallas as pl
from jax.experimental.pallas import tpu as pltpu

# ---- module dimensions (small, synthetic, consistent with the module) --------
DIM_V = 32           # opt['fusion']['dim_v']
DIM_Q = 32           # opt['fusion']['dim_q']
DIM_Z = 32           # opt['fusion']['dim_mm']
DIM_H = 300          # PairwiseModel.dim_h (fixed at 300 in __init__)
DH_PAD = 384         # dim_h lane-padded to 3 x 128 (MXU / lane aligned)
KNN   = 4            # knn_size
BATCH = 2
SEQ   = 8
VOCAB = 50
DIN   = 2 * DIM_V + DIM_Q + DIM_Z   # = 128, input dim of self.linear


# ------------------------------ Pallas kernel --------------------------------
def pairwise_score_kernel(vf_ref, q_ref, wv_ref, wq_ref, w1_ref, b1_ref, w2_ref,
                          out_ref):
    """One batch element per grid step; all math stays 2-D in VMEM.

    vf_ref : (1, K+1, DIM_V) f32   image features for this batch element
    q_ref  : (1, 1, DIM_Q)   f32   question embedding
    wv_ref : (DIM_V, DIM_Z)  f32   fusion weight (visual gate)
    wq_ref : (DIM_Q, DIM_Z)  f32   fusion weight (question gate)
    w1_ref : (DIN, DH_PAD)   bf16  self.linear.weight.T, lane-padded 300->384
    b1_ref : (1, DH_PAD)     f32   self.linear.bias (padded; slot DIM_H == 1.0)
    w2_ref : (1, DH_PAD)     f32   self.out.weight  (padded; slot DIM_H == out.bias)
    out_ref: (1, 1, K)       f32   scores, lane-dense along the last axis
    """
    v_all = vf_ref[0]                      # (K+1, DIM_V)
    v_orig = v_all[0:1, :]                 # (1, DIM_V)
    v_knn = v_all[1:, :]                   # (K, DIM_V)
    q = q_ref[0]                           # (1, DIM_Q)

    # --- vqa_model._fusion (gated tanh) for the K neighbours, kept in f32 -----
    gate_v = jnp.tanh(jnp.dot(v_knn, wv_ref[...],
                              preferred_element_type=jnp.float32))      # (K, DIM_Z)
    gate_q = jnp.tanh(jnp.dot(q, wq_ref[...],
                              preferred_element_type=jnp.float32))      # (1, DIM_Z)
    z = gate_v * gate_q                                                 # (K, DIM_Z)

    # --- self.linear: x @ W1 with x = [v_orig | v_other | q | z] --------------
    # Split matmul over row-blocks of W1 (no in-kernel concat); the per-batch
    # shared [v_orig | q] contribution is computed once and broadcast over K.
    bf16 = jnp.bfloat16
    h_shared = (
        jnp.dot(v_orig.astype(bf16), w1_ref[0:DIM_V, :],
                preferred_element_type=jnp.float32)
        + jnp.dot(q.astype(bf16), w1_ref[2 * DIM_V:2 * DIM_V + DIM_Q, :],
                  preferred_element_type=jnp.float32)
    )                                                                   # (1, DH_PAD)
    h_pair = (
        jnp.dot(v_knn.astype(bf16), w1_ref[DIM_V:2 * DIM_V, :],
                preferred_element_type=jnp.float32)
        + jnp.dot(z.astype(bf16), w1_ref[2 * DIM_V + DIM_Q:DIN, :],
                  preferred_element_type=jnp.float32)
    )                                                                   # (K, DH_PAD)
    h = jnp.maximum(h_shared + h_pair + b1_ref[...], 0.0)               # self.relu

    # --- self.out (single output unit): VPU multiply + lane reduction ---------
    # (out.bias rides in the padded slot DIM_H of b1/w2, so no b2 operand.)
    s = jnp.sum(h * w2_ref[...], axis=-1)                               # (K,)
    out_ref[...] = jnp.maximum(s, 0.0).reshape(1, 1, -1)                # self.relu


def pairwise_scores_pallas(image_features, q_emb, wv, wq, w1p, b1p, w2p):
    B, kp1, dim_v = image_features.shape
    K = kp1 - 1
    din, dh = w1p.shape
    out = pl.pallas_call(
        pairwise_score_kernel,
        out_shape=jax.ShapeDtypeStruct((B, 1, K), jnp.float32),
        grid=(B,),
        in_specs=[
            pl.BlockSpec((1, kp1, dim_v), lambda b: (b, 0, 0)),   # image feats
            pl.BlockSpec((1, 1, DIM_Q), lambda b: (b, 0, 0)),     # q_emb
            pl.BlockSpec((DIM_V, DIM_Z), lambda b: (0, 0)),       # wv (resident)
            pl.BlockSpec((DIM_Q, DIM_Z), lambda b: (0, 0)),       # wq (resident)
            pl.BlockSpec((din, dh), lambda b: (0, 0)),            # w1 (resident)
            pl.BlockSpec((1, dh), lambda b: (0, 0)),              # b1 (resident)
            pl.BlockSpec((1, dh), lambda b: (0, 0)),              # w2 (resident)
        ],
        out_specs=pl.BlockSpec((1, 1, K), lambda b: (b, 0, 0)),
        compiler_params=pltpu.CompilerParams(
            dimension_semantics=("parallel",)),
    )(image_features, q_emb.reshape(B, 1, DIM_Q), wv, wq, w1p, b1p, w2p)
    return out.reshape(B, K)


# --------------------------- synthetic parameters -----------------------------
def init_params(key):
    ks = jax.random.split(key, 7)
    # TODO(synk): vqa_model.seq2vec / _fusion / _classif are opaque external
    # modules; synthesized deterministically (embedding-mean + gated tanh
    # fusion). The classifier is dropped since PairwiseModel.forward never uses
    # a_orig / a_knns.
    emb = jax.random.normal(ks[0], (VOCAB, DIM_Q), jnp.float32) * 0.1
    wv = jax.random.normal(ks[1], (DIM_V, DIM_Z), jnp.float32) * 0.1
    wq = jax.random.normal(ks[2], (DIM_Q, DIM_Z), jnp.float32) * 0.1
    # PairwiseModel's own parameters (nn.Linear shapes from __init__):
    w1 = jax.random.normal(ks[3], (DIM_H, DIN), jnp.float32) / jnp.sqrt(DIN)
    b1 = jax.random.normal(ks[4], (DIM_H,), jnp.float32) * 0.01
    w2 = jax.random.normal(ks[5], (1, DIM_H), jnp.float32) / jnp.sqrt(DIM_H)
    b2 = jax.random.normal(ks[6], (1,), jnp.float32) * 0.01

    # Kernel-side parameters: transpose, zero-pad dim_h 300 -> 384 (lane/MXU
    # aligned; padded hidden units are exact zeros so they cannot leak), fold
    # out.bias into padded slot DIM_H (w1 column = 0, b1 = 1 => relu(1) = 1,
    # times w2 slot = b2, exactly), and store W1 as bf16 for the MXU.
    w1p = jnp.zeros((DIN, DH_PAD), jnp.float32).at[:, :DIM_H].set(w1.T)
    b1p = jnp.zeros((1, DH_PAD), jnp.float32).at[0, :DIM_H].set(b1)
    w2p = jnp.zeros((1, DH_PAD), jnp.float32).at[0, :DIM_H].set(w2[0])
    b1p = b1p.at[0, DIM_H].set(1.0)
    w2p = w2p.at[0, DIM_H].set(b2[0])
    return dict(emb=emb, wv=wv, wq=wq, w1=w1, b1=b1, w2=w2, b2=b2,
                w1p=w1p.astype(jnp.bfloat16), b1p=b1p, w2p=w2p)


# ----------------------------- model forward ----------------------------------
def pairwise_model_forward(params, image_features, question_wids, answer_aids=None):
    # answer_aids is unused by PairwiseModel.forward (matches the PyTorch module).
    del answer_aids
    # TODO(synk): vqa_model.seq2vec is an opaque external module; synthesized as
    # embedding lookup + mean (a gather — left to XLA, not a clean Pallas fit).
    q_emb = jnp.mean(params["emb"][question_wids], axis=1)          # (B, DIM_Q)
    scores = pairwise_scores_pallas(
        image_features.astype(jnp.float32),
        q_emb.astype(jnp.float32),
        params["wv"], params["wq"],
        params["w1p"], params["b1p"], params["w2p"])
    return scores                                                   # (B, knn_size)


def pairwise_model_forward_ref(params, image_features, question_wids):
    """Pure-JAX f32 reference mirroring the PyTorch forward (per-neighbor loop)."""
    B, kp1, _ = image_features.shape
    K = kp1 - 1
    q_emb = jnp.mean(params["emb"][question_wids], axis=1)
    v_all = image_features.reshape(B * kp1, DIM_V)
    q_dup = jnp.repeat(q_emb, kp1, axis=0)
    z_all = (jnp.tanh(v_all @ params["wv"]) * jnp.tanh(q_dup @ params["wq"])
             ).reshape(B, kp1, DIM_Z)
    scores = []
    for i in range(K):
        inp = jnp.concatenate(
            [image_features[:, 0], image_features[:, i + 1], q_emb, z_all[:, i + 1]],
            axis=1)
        h = jnp.maximum(inp @ params["w1"].T + params["b1"], 0.0)
        s = jnp.maximum(h @ params["w2"].T + params["b2"], 0.0)
        scores.append(s)
    return jnp.concatenate(scores, axis=1)


# ----------------------------------- main --------------------------------------
if __name__ == "__main__":
    key = jax.random.PRNGKey(0)
    kp, kx, kq = jax.random.split(key, 3)
    params = init_params(kp)

    image_features = jax.random.normal(kx, (BATCH, KNN + 1, DIM_V), jnp.float32)
    question_wids = jax.random.randint(kq, (BATCH, SEQ), 0, VOCAB)
    answer_aids = jnp.zeros((BATCH,), jnp.int32)  # unused by forward (as in PyTorch)

    scores = pairwise_model_forward(params, image_features, question_wids, answer_aids)
    jax.block_until_ready(scores)

    ref = pairwise_model_forward_ref(params, image_features, question_wids)
    assert scores.shape == (BATCH, KNN)
    # bf16 MXU inputs for W1 (f32 accumulation / bias / ReLU) => loosened tolerance.
    assert jnp.allclose(scores, ref, atol=3e-2, rtol=3e-2), float(jnp.max(jnp.abs(scores - ref)))

    print("KERNEL_OK")
</pallas_src>

<mosaic_0001>
module attributes {stable_mosaic.version = 11 : i64} {
  func.func @pairwise_score_kernel(%arg0: i32, %arg1: memref<1x5x32xf32, #tpu.memory_space<vmem>>, %arg2: memref<1x1x32xf32, #tpu.memory_space<vmem>>, %arg3: memref<32x32xf32, #tpu.memory_space<vmem>>, %arg4: memref<32x32xf32, #tpu.memory_space<vmem>>, %arg5: memref<128x384xbf16, #tpu.memory_space<vmem>>, %arg6: memref<1x384xf32, #tpu.memory_space<vmem>>, %arg7: memref<1x384xf32, #tpu.memory_space<vmem>>, %arg8: memref<1x1x4xf32, #tpu.memory_space<vmem>>) attributes {dimension_semantics = [#tpu.dimension_semantics<parallel>], iteration_bounds = array<i64: 2>, scalar_prefetch = 0 : i64, scratch_operands = 0 : i64, tpu.core_type = #tpu.core_type<tc>, window_params = [{transform_indices = @transform_0, window_bounds = array<i64: 1, 5, 32>}, {transform_indices = @transform_1, window_bounds = array<i64: 1, 1, 32>}, {pipeline_mode = #tpu.pipeline_mode<synchronous>, transform_indices = @transform_2, window_bounds = array<i64: 32, 32>}, {pipeline_mode = #tpu.pipeline_mode<synchronous>, transform_indices = @transform_3, window_bounds = array<i64: 32, 32>}, {pipeline_mode = #tpu.pipeline_mode<synchronous>, transform_indices = @transform_4, window_bounds = array<i64: 128, 384>}, {pipeline_mode = #tpu.pipeline_mode<synchronous>, transform_indices = @transform_5, window_bounds = array<i64: 1, 384>}, {pipeline_mode = #tpu.pipeline_mode<synchronous>, transform_indices = @transform_6, window_bounds = array<i64: 1, 384>}, {transform_indices = @transform_7, window_bounds = array<i64: 1, 1, 4>}]} {
    %c0 = arith.constant 0 : index
    %c0_0 = arith.constant 0 : index
    %c0_1 = arith.constant 0 : index
    %0 = vector.load %arg1[%c0, %c0_0, %c0_1] : memref<1x5x32xf32, #tpu.memory_space<vmem>>, vector<1x5x32xf32>
    %1 = vector.shape_cast %0 : vector<1x5x32xf32> to vector<5x32xf32>
    %2 = vector.extract_strided_slice %1 {offsets = [0, 0], sizes = [1, 32], strides = [1, 1]} : vector<5x32xf32> to vector<1x32xf32>
    %3 = vector.extract_strided_slice %1 {offsets = [1, 0], sizes = [4, 32], strides = [1, 1]} : vector<5x32xf32> to vector<4x32xf32>
    %c0_2 = arith.constant 0 : index
    %c0_3 = arith.constant 0 : index
    %c0_4 = arith.constant 0 : index
    %4 = vector.load %arg2[%c0_2, %c0_3, %c0_4] : memref<1x1x32xf32, #tpu.memory_space<vmem>>, vector<1x1x32xf32>
    %5 = vector.shape_cast %4 : vector<1x1x32xf32> to vector<1x32xf32>
    %c0_5 = arith.constant 0 : index
    %c0_6 = arith.constant 0 : index
    %6 = vector.load %arg3[%c0_5, %c0_6] : memref<32x32xf32, #tpu.memory_space<vmem>>, vector<32x32xf32>
    %cst = arith.constant dense<0.000000e+00> : vector<4x32xf32>
    %7 = tpu.matmul %3, %6, %cst {dimension_numbers = #tpu.dot_dimension_numbers<[1], [0], [0], [1], [0, 0, 1, 1], [], []>} : vector<4x32xf32>, vector<32x32xf32>, vector<4x32xf32> -> vector<4x32xf32>
    %8 = math.tanh %7 : vector<4x32xf32>
    %c0_7 = arith.constant 0 : index
    %c0_8 = arith.constant 0 : index
    %9 = vector.load %arg4[%c0_7, %c0_8] : memref<32x32xf32, #tpu.memory_space<vmem>>, vector<32x32xf32>
    %cst_9 = arith.constant dense<0.000000e+00> : vector<1x32xf32>
    %10 = tpu.matmul %5, %9, %cst_9 {dimension_numbers = #tpu.dot_dimension_numbers<[1], [0], [0], [1], [0, 0, 1, 1], [], []>} : vector<1x32xf32>, vector<32x32xf32>, vector<1x32xf32> -> vector<1x32xf32>
    %11 = math.tanh %10 : vector<1x32xf32>
    %12 = vector.broadcast %11 : vector<1x32xf32> to vector<4x32xf32>
    %13 = arith.mulf %8, %12 : vector<4x32xf32>
    %14 = arith.truncf %2 : vector<1x32xf32> to vector<1x32xbf16>
    %c0_10 = arith.constant 0 : index
    %c0_11 = arith.constant 0 : index
    %15 = vector.load %arg5[%c0_10, %c0_11] : memref<128x384xbf16, #tpu.memory_space<vmem>>, vector<32x384xbf16>
    %cst_12 = arith.constant dense<0.000000e+00> : vector<1x384xf32>
    %16 = tpu.matmul %14, %15, %cst_12 {dimension_numbers = #tpu.dot_dimension_numbers<[1], [0], [0], [1], [0, 0, 1, 1], [], []>} : vector<1x32xbf16>, vector<32x384xbf16>, vector<1x384xf32> -> vector<1x384xf32>
    %17 = arith.truncf %5 : vector<1x32xf32> to vector<1x32xbf16>
    %c64 = arith.constant 64 : index
    %c0_13 = arith.constant 0 : index
    %18 = vector.load %arg5[%c64, %c0_13] : memref<128x384xbf16, #tpu.memory_space<vmem>>, vector<32x384xbf16>
    %cst_14 = arith.constant dense<0.000000e+00> : vector<1x384xf32>
    %19 = tpu.matmul %17, %18, %cst_14 {dimension_numbers = #tpu.dot_dimension_numbers<[1], [0], [0], [1], [0, 0, 1, 1], [], []>} : vector<1x32xbf16>, vector<32x384xbf16>, vector<1x384xf32> -> vector<1x384xf32>
    %20 = arith.addf %16, %19 : vector<1x384xf32>
    %21 = arith.truncf %3 : vector<4x32xf32> to vector<4x32xbf16>
    %c32 = arith.constant 32 : index
    %c0_15 = arith.constant 0 : index
    %22 = vector.load %arg5[%c32, %c0_15] : memref<128x384xbf16, #tpu.memory_space<vmem>>, vector<32x384xbf16>
    %cst_16 = arith.constant dense<0.000000e+00> : vector<4x384xf32>
    %23 = tpu.matmul %21, %22, %cst_16 {dimension_numbers = #tpu.dot_dimension_numbers<[1], [0], [0], [1], [0, 0, 1, 1], [], []>} : vector<4x32xbf16>, vector<32x384xbf16>, vector<4x384xf32> -> vector<4x384xf32>
    %24 = arith.truncf %13 : vector<4x32xf32> to vector<4x32xbf16>
    %c96 = arith.constant 96 : index
    %c0_17 = arith.constant 0 : index
    %25 = vector.load %arg5[%c96, %c0_17] : memref<128x384xbf16, #tpu.memory_space<vmem>>, vector<32x384xbf16>
    %cst_18 = arith.constant dense<0.000000e+00> : vector<4x384xf32>
    %26 = tpu.matmul %24, %25, %cst_18 {dimension_numbers = #tpu.dot_dimension_numbers<[1], [0], [0], [1], [0, 0, 1, 1], [], []>} : vector<4x32xbf16>, vector<32x384xbf16>, vector<4x384xf32> -> vector<4x384xf32>
    %27 = arith.addf %23, %26 : vector<4x384xf32>
    %28 = vector.broadcast %20 : vector<1x384xf32> to vector<4x384xf32>
    %29 = arith.addf %28, %27 : vector<4x384xf32>
    %c0_19 = arith.constant 0 : index
    %c0_20 = arith.constant 0 : index
    %30 = vector.load %arg6[%c0_19, %c0_20] : memref<1x384xf32, #tpu.memory_space<vmem>>, vector<1x384xf32>
    %31 = vector.broadcast %30 : vector<1x384xf32> to vector<4x384xf32>
    %32 = arith.addf %29, %31 : vector<4x384xf32>
    %cst_21 = arith.constant 0.000000e+00 : f32
    %33 = vector.broadcast %cst_21 : f32 to vector<4x384xf32>
    %34 = arith.maximumf %32, %33 : vector<4x384xf32>
    %c0_22 = arith.constant 0 : index
    %c0_23 = arith.constant 0 : index
    %35 = vector.load %arg7[%c0_22, %c0_23] : memref<1x384xf32, #tpu.memory_space<vmem>>, vector<1x384xf32>
    %36 = vector.broadcast %35 : vector<1x384xf32> to vector<4x384xf32>
    %37 = arith.mulf %34, %36 : vector<4x384xf32>
    %cst_24 = arith.constant dense<0.000000e+00> : vector<4xf32>
    %38 = vector.multi_reduction <add>, %37, %cst_24 [1] : vector<4x384xf32> to vector<4xf32>
    %cst_25 = arith.constant 0.000000e+00 : f32
    %39 = vector.broadcast %cst_25 : f32 to vector<4xf32>
    %40 = arith.maximumf %38, %39 : vector<4xf32>
    %41 = vector.shape_cast %40 : vector<4xf32> to vector<1x1x4xf32>
    %c0_26 = arith.constant 0 : index
    %c0_27 = arith.constant 0 : index
    %c0_28 = arith.constant 0 : index
    %42 = vector.load %arg8[%c0_26, %c0_27, %c0_28] : memref<1x1x4xf32, #tpu.memory_space<vmem>>, vector<1x1x4xf32>
    tpu.vector_store %arg8[%c0_26, %c0_27, %c0_28], %41 {strides = array<i32>} : memref<1x1x4xf32, #tpu.memory_space<vmem>>, vector<1x1x4xf32>,
    return
  }
  func.func @transform_0(%arg0: i32) -> (i32, i32, i32) {
    %c0_i32 = arith.constant 0 : i32
    %c0_i32_0 = arith.constant 0 : i32
    %c0_i32_1 = arith.constant 0 : i32
    return %arg0, %c0_i32, %c0_i32_0 : i32, i32, i32
  }
  func.func @transform_1(%arg0: i32) -> (i32, i32, i32) {
    %c0_i32 = arith.constant 0 : i32
    %c0_i32_0 = arith.constant 0 : i32
    %c0_i32_1 = arith.constant 0 : i32
    return %arg0, %c0_i32, %c0_i32_0 : i32, i32, i32
  }
  func.func @transform_2(%arg0: i32) -> (i32, i32) {
    %c0_i32 = arith.constant 0 : i32
    %c0_i32_0 = arith.constant 0 : i32
    %c0_i32_1 = arith.constant 0 : i32
    return %c0_i32, %c0_i32_0 : i32, i32
  }
  func.func @transform_3(%arg0: i32) -> (i32, i32) {
    %c0_i32 = arith.constant 0 : i32
    %c0_i32_0 = arith.constant 0 : i32
    %c0_i32_1 = arith.constant 0 : i32
    return %c0_i32, %c0_i32_0 : i32, i32
  }
  func.func @transform_4(%arg0: i32) -> (i32, i32) {
    %c0_i32 = arith.constant 0 : i32
    %c0_i32_0 = arith.constant 0 : i32
    %c0_i32_1 = arith.constant 0 : i32
    return %c0_i32, %c0_i32_0 : i32, i32
  }
  func.func @transform_5(%arg0: i32) -> (i32, i32) {
    %c0_i32 = arith.constant 0 : i32
    %c0_i32_0 = arith.constant 0 : i32
    %c0_i32_1 = arith.constant 0 : i32
    return %c0_i32, %c0_i32_0 : i32, i32
  }
  func.func @transform_6(%arg0: i32) -> (i32, i32) {
    %c0_i32 = arith.constant 0 : i32
    %c0_i32_0 = arith.constant 0 : i32
    %c0_i32_1 = arith.constant 0 : i32
    return %c0_i32, %c0_i32_0 : i32, i32
  }
  func.func @transform_7(%arg0: i32) -> (i32, i32, i32) {
    %c0_i32 = arith.constant 0 : i32
    %c0_i32_0 = arith.constant 0 : i32
    %c0_i32_1 = arith.constant 0 : i32
    return %arg0, %c0_i32, %c0_i32_0 : i32, i32, i32
  }
}

</mosaic_0001>

<llo_original>
// kernel: tpu_custom_call.1
$region0: #{tpu_custom_call.1}
  #allocation0 [shape = 'u32[]', space=smem, size = 0x4, offset = 0x4, fixed_abs, tag = 'smem constant byte address 0x4 - core index']
  #allocation1 [shape = 'u32[144,128]{1,0:T(1,128)}', space=vmem, size = 0x12000, scoped, tag = 'internal scratch']
  %s0 = inlined_call_operand.vmem [shape: f32[2,5,32], index: 0, kind: input, shape index: {}]
  %s1 = inlined_call_operand.hbm [shape: f32[2,1,32], index: 1, kind: input, shape index: {}]
  %s2 = inlined_call_operand.vmem [shape: f32[32,32], index: 2, kind: input, shape index: {}]
  %s3 = inlined_call_operand.hbm [shape: f32[32,32], index: 3, kind: input, shape index: {}]
  %s4 = inlined_call_operand.hbm [shape: bf16[128,384], index: 4, kind: input, shape index: {}]
  %s5 = inlined_call_operand.vmem [shape: f32[1,384], index: 5, kind: input, shape index: {}]
  %s6 = inlined_call_operand.vmem [shape: f32[1,384], index: 6, kind: input, shape index: {}]
  %s7 = inlined_call_operand.hbm [shape: f32[2,1,4], index: 7, kind: output, shape index: {}]
  %s8 = sld [smem:[#allocation0]]
  $region73: #{tpu_custom_call.1} parent=0
    _
  %s10 = ssub.s32 1, %s8
  %s11 = scalar_select 0, %s10, %s8
  $region1: #{tpu_custom_call.1} parent=0
    #allocation2 [shape = 'u8[1024]{0}', space=vmem, size = 0x400, scoped, tag = 'input window, operand 1']
    #allocation3 [shape = 's32[2]{0}', space=sflag, size = 0x8, scoped, tag = 'scoped memory for tpu_custom_call.1']
    #allocation4 [shape = 's32[2]{0}', space=sflag, size = 0x8, scoped, tag = 'scoped memory for tpu_custom_call.1']
    #allocation5 [shape = 'u8[16384]{0}', space=vmem, size = 0x4000, scoped, tag = 'input window, operand 3, single buffered']
    #allocation6 [shape = 's32[1]{0}', space=sflag, size = 0x4, scoped, tag = 'scoped memory for tpu_custom_call.1']
    #allocation7 [shape = 'u8[98304]{0}', space=vmem, size = 0x18000, scoped, tag = 'input window, operand 4, single buffered']
    #allocation8 [shape = 'u8[1024]{0}', space=vmem, size = 0x400, scoped, tag = 'output window, operand 0']
    %12 = vsyncpa [#allocation3], 0
    %s13 = scalar_lea.sflag [#allocation3], 1
    %14 = vsyncpa %s13, 0
    %15 = vsyncpa [#allocation6], 0
    %16 = vsyncpa [#allocation4], 0
    %s17 = scalar_lea.sflag [#allocation4], 1
    %18 = vsyncpa %s17, 0
    loop: start=0, step=1, limit=4
    $region2: #{tpu_custom_call.1} parent=1 // loop_pre_header
      _
    $region3: #{tpu_custom_call.1} parent=1 // loop_header
      %s20 = sphi 0, %s24
      %p21 = scmp.ge.s32.totalorder %s20, 4
      %s30 = sphi 0, %s32
      %s33 = sphi 0, %s30
      %s34 = sphi 0, %s33
      %s50 = sphi 0, %s34
      %s56 = sphi 0, %s58
      %s59 = sphi 0, %s56
      %s60 = sphi 0, %s59
      %s76 = sphi 0, %s60
      %s80 = sphi 0, %s80
      %s82 = sphi 0, %s80
      %s83 = sphi 0, %s82
      %s97 = sphi 0, %s83
      %s101 = sphi 0, %s101
      %s103 = sphi 0, %s101
      %s104 = sphi 0, %s103
      %s118 = sphi 0, %s104
      %s122 = sphi 0, %s122
      %s124 = sphi 0, %s122
      %s125 = sphi 0, %s124
      %s139 = sphi 0, %s125
      %s143 = sphi 0, %s143
      %s145 = sphi 0, %s143
      %s146 = sphi 0, %s145
      %s160 = sphi 0, %s146
      %s164 = sphi 0, %s164
      %s166 = sphi 0, %s164
      %s167 = sphi 0, %s166
      %s181 = sphi 0, %s167
      %s187 = sphi 0, %s189
      %s190 = sphi 0, %s187
      %s191 = sphi 0, %s190
      %s207 = sphi 0, %s191
    $region4: #{tpu_custom_call.1} parent=1 // loop_header_branch
      %23 = sbr.rel (%p21) target = $region8
    $region5: #{tpu_custom_call.1} parent=1 // loop_body
      %s25 = ssub.s32 %s20, 1
      %s26 = ssub.s32 %s20, 2
      %s27 = sadd.s32 %s20, 1
      %s28 = ssub.s32 %s20, %s27
      %p29 = scmp.eq.s32.totalorder %s28, 0
      %s31 = sadd.s32 %s30, 1
      %s32 = scalar_select %p29, %s30, %s31
      %p35 = pneg %p29
      %p36 = scmp.eq.s32.totalorder %s20, 1
      %p37 = por %p35, %p36
      %p38 = scmp.ne.s32.totalorder %s30, %s33
      %p39 = scmp.eq.s32.totalorder %s20, 0
      %p40 = por %p38, %p39
      %p41 = scmp.ne.s32.totalorder %s30, %s33
      %p42 = scmp.eq.s32.totalorder %s25, 1
      %p43 = por %p41, %p42
      %p44 = scmp.ne.s32.totalorder %s33, %s34
      %p45 = scmp.eq.s32.totalorder %s25, 0
      %p46 = por %p44, %p45
      %p47 = scmp.ne.s32.totalorder %s33, %s34
      %p48 = scmp.eq.s32.totalorder %s26, 1
      %p49 = por %p47, %p48
      %p51 = scmp.ne.s32.totalorder %s34, %s50
      %p52 = scmp.eq.s32.totalorder %s26, 0
      %p53 = por %p51, %p52
      %s54 = ssub.s32 %s20, %s27
      %p55 = scmp.eq.s32.totalorder %s54, 0
      %s57 = sadd.s32 %s56, 1
      %s58 = scalar_select %p55, %s56, %s57
      %p61 = pneg %p55
      %p62 = scmp.eq.s32.totalorder %s20, 1
      %p63 = por %p61, %p62
      %p64 = scmp.ne.s32.totalorder %s56, %s59
      %p65 = scmp.eq.s32.totalorder %s20, 0
      %p66 = por %p64, %p65
      %p67 = scmp.ne.s32.totalorder %s56, %s59
      %p68 = scmp.eq.s32.totalorder %s25, 1
      %p69 = por %p67, %p68
      %p70 = scmp.ne.s32.totalorder %s59, %s60
      %p71 = scmp.eq.s32.totalorder %s25, 0
      %p72 = por %p70, %p71
      %p73 = scmp.ne.s32.totalorder %s59, %s60
      %p74 = scmp.eq.s32.totalorder %s26, 1
      %p75 = por %p73, %p74
      %p77 = scmp.ne.s32.totalorder %s60, %s76
      %p78 = scmp.eq.s32.totalorder %s26, 0
      %p79 = por %p77, %p78
      %s81 = sadd.s32 %s80, 1
      %p84 = scmp.eq.s32.totalorder %s20, 1
      %p85 = scmp.ne.s32.totalorder %s80, %s82
      %p86 = scmp.eq.s32.totalorder %s20, 0
      %p87 = por %p85, %p86
      %p88 = scmp.ne.s32.totalorder %s80, %s82
      %p89 = scmp.eq.s32.totalorder %s25, 1
      %p90 = por %p88, %p89
      %p91 = scmp.ne.s32.totalorder %s82, %s83
      %p92 = scmp.eq.s32.totalorder %s25, 0
      %p93 = por %p91, %p92
      %p94 = scmp.ne.s32.totalorder %s82, %s83
      %p95 = scmp.eq.s32.totalorder %s26, 1
      %p96 = por %p94, %p95
      %p98 = scmp.ne.s32.totalorder %s83, %s97
      %p99 = scmp.eq.s32.totalorder %s26, 0
      %p100 = por %p98, %p99
      %s102 = sadd.s32 %s101, 1
      %p105 = scmp.eq.s32.totalorder %s20, 1
      %p106 = scmp.ne.s32.totalorder %s101, %s103
      %p107 = scmp.eq.s32.totalorder %s20, 0
      %p108 = por %p106, %p107
      %p109 = scmp.ne.s32.totalorder %s101, %s103
      %p110 = scmp.eq.s32.totalorder %s25, 1
      %p111 = por %p109, %p110
      %p112 = scmp.ne.s32.totalorder %s103, %s104
      %p113 = scmp.eq.s32.totalorder %s25, 0
      %p114 = por %p112, %p113
      %p115 = scmp.ne.s32.totalorder %s103, %s104
      %p116 = scmp.eq.s32.totalorder %s26, 1
      %p117 = por %p115, %p116
      %p119 = scmp.ne.s32.totalorder %s104, %s118
      %p120 = scmp.eq.s32.totalorder %s26, 0
      %p121 = por %p119, %p120
      %s123 = sadd.s32 %s122, 1
      %p126 = scmp.eq.s32.totalorder %s20, 1
      %p127 = scmp.ne.s32.totalorder %s122, %s124
      %p128 = scmp.eq.s32.totalorder %s20, 0
      %p129 = por %p127, %p128
      %p130 = scmp.ne.s32.totalorder %s122, %s124
      %p131 = scmp.eq.s32.totalorder %s25, 1
      %p132 = por %p130, %p131
      %p133 = scmp.ne.s32.totalorder %s124, %s125
      %p134 = scmp.eq.s32.totalorder %s25, 0
      %p135 = por %p133, %p134
      %p136 = scmp.ne.s32.totalorder %s124, %s125
      %p137 = scmp.eq.s32.totalorder %s26, 1
      %p138 = por %p136, %p137
      %p140 = scmp.ne.s32.totalorder %s125, %s139
      %p141 = scmp.eq.s32.totalorder %s26, 0
      %p142 = por %p140, %p141
      %s144 = sadd.s32 %s143, 1
      %p147 = scmp.eq.s32.totalorder %s20, 1
      %p148 = scmp.ne.s32.totalorder %s143, %s145
      %p149 = scmp.eq.s32.totalorder %s20, 0
      %p150 = por %p148, %p149
      %p151 = scmp.ne.s32.totalorder %s143, %s145
      %p152 = scmp.eq.s32.totalorder %s25, 1
      %p153 = por %p151, %p152
      %p154 = scmp.ne.s32.totalorder %s145, %s146
      %p155 = scmp.eq.s32.totalorder %s25, 0
      %p156 = por %p154, %p155
      %p157 = scmp.ne.s32.totalorder %s145, %s146
      %p158 = scmp.eq.s32.totalorder %s26, 1
      %p159 = por %p157, %p158
      %p161 = scmp.ne.s32.totalorder %s146, %s160
      %p162 = scmp.eq.s32.totalorder %s26, 0
      %p163 = por %p161, %p162
      %s165 = sadd.s32 %s164, 1
      %p168 = scmp.eq.s32.totalorder %s20, 1
      %p169 = scmp.ne.s32.totalorder %s164, %s166
      %p170 = scmp.eq.s32.totalorder %s20, 0
      %p171 = por %p169, %p170
      %p172 = scmp.ne.s32.totalorder %s164, %s166
      %p173 = scmp.eq.s32.totalorder %s25, 1
      %p174 = por %p172, %p173
      %p175 = scmp.ne.s32.totalorder %s166, %s167
      %p176 = scmp.eq.s32.totalorder %s25, 0
      %p177 = por %p175, %p176
      %p178 = scmp.ne.s32.totalorder %s166, %s167
      %p179 = scmp.eq.s32.totalorder %s26, 1
      %p180 = por %p178, %p179
      %p182 = scmp.ne.s32.totalorder %s167, %s181
      %p183 = scmp.eq.s32.totalorder %s26, 0
      %p184 = por %p182, %p183
      %s185 = ssub.s32 %s20, %s27
      %p186 = scmp.eq.s32.totalorder %s185, 0
      %s188 = sadd.s32 %s187, 1
      %s189 = scalar_select %p186, %s187, %s188
      %p192 = pneg %p186
      %p193 = scmp.eq.s32.totalorder %s20, 1
      %p194 = por %p192, %p193
      %p195 = scmp.ne.s32.totalorder %s187, %s190
      %p196 = scmp.eq.s32.totalorder %s20, 0
      %p197 = por %p195, %p196
      %p198 = scmp.ne.s32.totalorder %s187, %s190
      %p199 = scmp.eq.s32.totalorder %s25, 1
      %p200 = por %p198, %p199
      %p201 = scmp.ne.s32.totalorder %s190, %s191
      %p202 = scmp.eq.s32.totalorder %s25, 0
      %p203 = por %p201, %p202
      %p204 = scmp.ne.s32.totalorder %s190, %s191
      %p205 = scmp.eq.s32.totalorder %s26, 1
      %p206 = por %p204, %p205
      %p208 = scmp.ne.s32.totalorder %s191, %s207
      %p209 = scmp.eq.s32.totalorder %s26, 0
      %p210 = por %p208, %p209
      %p211 = scmp.le.s32.totalorder 1, %s20
      %p212 = scmp.lt.s32.totalorder %s20, 3
      %p213 = pnand %p211, %p212
      %p214 = pneg %p213
      // Predicated region
      $region9: #{tpu_custom_call.1} parent=5 // pred_check
        _
      $region10: #{tpu_custom_call.1} parent=5 // pred_check_branch
        %216 = sbr.rel (%p213) target = $region12
      $region11: #{tpu_custom_call.1} parent=5 // pred_region
        %s217 = ssub.s32 %s20, 1
        // Predicated region
        $region13: #{tpu_custom_call.1} parent=11 // pred_check
          %p218 = pneg %p93
        $region14: #{tpu_custom_call.1} parent=11 // pred_check_branch
          %220 = sbr.rel (%p218) target = $region16
        $region15: #{tpu_custom_call.1} parent=11 // pred_region
          _
        $region16: #{tpu_custom_call.1} parent=11 // pred_fallthru
          _
        // Predicated region
        $region17: #{tpu_custom_call.1} parent=11 // pred_check
          %p221 = pneg %p114
        $region18: #{tpu_custom_call.1} parent=11 // pred_check_branch
          %223 = sbr.rel (%p221) target = $region20
        $region19: #{tpu_custom_call.1} parent=11 // pred_region
          %s225 = ssub.s32 512, 512
          %226 = vsyncadd [#allocation6], %s225
          %s227 = sshll.u32 [#allocation5], 4
          %s228 = int_to_ptr.vmem [resolvable:$true] %s227
          %233 = dma.hbm_to_vmem [thread:$0]  %s3, 512, %s228, [#allocation6], 128, 128, 8
        $region20: #{tpu_custom_call.1} parent=11 // pred_fallthru
          _
        // Predicated region
        $region21: #{tpu_custom_call.1} parent=11 // pred_check
          %p234 = pneg %p135
        $region22: #{tpu_custom_call.1} parent=11 // pred_check_branch
          %236 = sbr.rel (%p234) target = $region24
        $region23: #{tpu_custom_call.1} parent=11 // pred_region
          %s238 = ssub.s32 3072, 3072
          %239 = vsyncadd [#allocation6], %s238
          %s240 = sshll.u32 [#allocation7], 4
          %s241 = int_to_ptr.vmem [resolvable:$true] %s240
          %246 = dma.hbm_to_vmem [thread:$0]  %s4, 3072, %s241, [#allocation6], 192, 192, 12
        $region24: #{tpu_custom_call.1} parent=11 // pred_fallthru
          _
        // Predicated region
        $region25: #{tpu_custom_call.1} parent=11 // pred_check
          %p247 = pneg %p156
        $region26: #{tpu_custom_call.1} parent=11 // pred_check_branch
          %249 = sbr.rel (%p247) target = $region28
        $region27: #{tpu_custom_call.1} parent=11 // pred_region
          _
        $region28: #{tpu_custom_call.1} parent=11 // pred_fallthru
          _
        // Predicated region
        $region29: #{tpu_custom_call.1} parent=11 // pred_check
          %p250 = pneg %p177
        $region30: #{tpu_custom_call.1} parent=11 // pred_check_branch
          %252 = sbr.rel (%p250) target = $region32
        $region31: #{tpu_custom_call.1} parent=11 // pred_region
          _
        $region32: #{tpu_custom_call.1} parent=11 // pred_fallthru
          _
      $region12: #{tpu_custom_call.1} parent=5 // pred_fallthru
        _
      %p253 = scmp.lt.s32.totalorder %s20, 2
      // Predicated region
      $region33: #{tpu_custom_call.1} parent=5 // pred_check
        %p254 = pneg %p253
      $region34: #{tpu_custom_call.1} parent=5 // pred_check_branch
        %256 = sbr.rel (%p254) target = $region36
      $region35: #{tpu_custom_call.1} parent=5 // pred_region
        // Predicated region
        $region37: #{tpu_custom_call.1} parent=35 // pred_check
          %p257 = pneg %p40
        $region38: #{tpu_custom_call.1} parent=35 // pred_check_branch
          %259 = sbr.rel (%p257) target = $region40
        $region39: #{tpu_custom_call.1} parent=35 // pred_region
          %p260 = scmp.lt.s32.totalorder %s20, 1
          %s261 = scalar_select %p260, %s20, 1
          %s262 = smul.addr %s261, 8
          %s263 = scalar_lea.vmem %s0, %s262
        $region40: #{tpu_custom_call.1} parent=35 // pred_fallthru
          _
        // Predicated region
        $region41: #{tpu_custom_call.1} parent=35 // pred_check
          %p264 = pneg %p66
        $region42: #{tpu_custom_call.1} parent=35 // pred_check_branch
          %266 = sbr.rel (%p264) target = $region44
        $region43: #{tpu_custom_call.1} parent=35 // pred_region
          %s267 = sand.u32 %s56, 1
          %s268 = scalar_lea.sflag [#allocation3], %s267
          %s269 = sand.u32 %s56, 1
          %s270 = scalar_lea.vmem [#allocation2], %s269
          %s272 = ssub.s32 16, 16
          %273 = vsyncadd %s268, %s272
          %s274 = smul.addr %s20, 16
          %s275 = scalar_lea.hbm %s1, %s274
          %s277 = sshll.u32 %s270, 4
          %s278 = int_to_ptr.vmem [resolvable:$true] %s277
          %280 = dma.hbm_to_vmem [thread:$0]  %s275, 16, %s278, %s268
        $region44: #{tpu_custom_call.1} parent=35 // pred_fallthru
          _
      $region36: #{tpu_custom_call.1} parent=5 // pred_fallthru
        _
      %p281 = scmp.le.s32.totalorder 1, %s20
      %p282 = scmp.lt.s32.totalorder %s20, 3
      %p283 = pnand %p281, %p282
      %p284 = pneg %p283
      // Predicated region
      $region45: #{tpu_custom_call.1} parent=5 // pred_check
        _
      $region46: #{tpu_custom_call.1} parent=5 // pred_check_branch
        %286 = sbr.rel (%p283) target = $region48
      $region47: #{tpu_custom_call.1} parent=5 // pred_region
        %s287 = ssub.s32 %s20, 1
        %s288 = sand.u32 %s59, 1
        %s289 = scalar_lea.sflag [#allocation3], %s288
        %s290 = sand.u32 %s59, 1
        %s291 = scalar_lea.vmem [#allocation2], %s290
        // Predicated region
        $region49: #{tpu_custom_call.1} parent=47 // pred_check
          %p292 = pneg %p72
        $region50: #{tpu_custom_call.1} parent=47 // pred_check_branch
          %294 = sbr.rel (%p292) target = $region52
        $region51: #{tpu_custom_call.1} parent=47 // pred_region
          %295 = dma.done %s289, 16
        $region52: #{tpu_custom_call.1} parent=47 // pred_fallthru
          _
        // Predicated region
        $region53: #{tpu_custom_call.1} parent=47 // pred_check
          %p296 = pneg %p114
        $region54: #{tpu_custom_call.1} parent=47 // pred_check_branch
          %298 = sbr.rel (%p296) target = $region56
        $region55: #{tpu_custom_call.1} parent=47 // pred_region
          %299 = dma.done [#allocation6], 512
        $region56: #{tpu_custom_call.1} parent=47 // pred_fallthru
          _
        // Predicated region
        $region57: #{tpu_custom_call.1} parent=47 // pred_check
          %p300 = pneg %p135
        $region58: #{tpu_custom_call.1} parent=47 // pred_check_branch
          %302 = sbr.rel (%p300) target = $region60
        $region59: #{tpu_custom_call.1} parent=47 // pred_region
          %303 = dma.done [#allocation6], 3072
        $region60: #{tpu_custom_call.1} parent=47 // pred_fallthru
          _
        %p304 = scmp.lt.s32.totalorder %s25, 1
        %s305 = scalar_select %p304, %s25, 1
        %s306 = smul.addr %s305, 8
        %s307 = scalar_lea.vmem %s0, %s306
        %p308 = pneg %p46
        %p309 = pneg %p43
        %s310 = sand.u32 %s59, 1
        %s311 = scalar_lea.sflag [#allocation3], %s310
        %s312 = sand.u32 %s59, 1
        %s313 = scalar_lea.vmem [#allocation2], %s312
        %p314 = pneg %p72
        %p315 = pneg %p69
        %p316 = pneg %p93
        %p317 = pneg %p90
        %p318 = pneg %p114
        %p319 = pneg %p111
        %p320 = pneg %p135
        %p321 = pneg %p132
        %p322 = pneg %p156
        %p323 = pneg %p153
        %p324 = pneg %p177
        %p325 = pneg %p174
        %p326 = pneg %p203
        %p327 = pneg %p200
        %s328 = sand.u32 %s190, 1
        %s329 = scalar_lea.sflag [#allocation4], %s328
        %s330 = sand.u32 %s190, 1
        %s331 = scalar_lea.vmem [#allocation8], %s330
        %p332 = scmp.lt.s32.totalorder %s25, 1
        %s333 = scalar_select %p332, %s25, 1
        %s334 = smul.addr %s333, 8
        %s335 = scalar_lea.vmem %s0, %s334
        %v337 = vld [vmem:[%s335] sm:$0x1f]
        %v338 = vld [vmem:[%s291] sm:$0x1]
        %v339 = vld [vmem:[%s2] sm:$0xff]
        %v340 = vld [vmem:[%s2 + $0x8] sm:$0xff]
        %v341 = vld [vmem:[%s2 + $0x10] sm:$0xff]
        %v342 = vld [vmem:[%s2 + $0x18] sm:$0xff]
        %v344 = vrot.slane %v337, 1
        %vm345 = vcmask 261120
        %v346 = vsel %vm345, %v344, 0
        %348 = vmatprep.subr.mxu0 0.0
        %349 = vmatpush1.msra.mxu0 %v339
        %350 = vmatprep.subr.mxu0 0.0
        %351 = vmatpush1.msra.mxu0 %v340
        %352 = vmatprep.subr.mxu0 0.0
        %353 = vmatpush1.msra.mxu0 %v341
        %354 = vmatprep.subr.mxu0 0.0
        %355 = vmatpush1.msra.mxu0 %v342
        %356 = vmatprep.subr.mxu0 0.0
        %357 = vmatpush1.msra.mxu0 0.0
        %358 = vmatprep.subr.mxu0 0.0
        %359 = vmatpush1.msra.mxu0 0.0
        %360 = vmatprep.subr.mxu0 0.0
        %361 = vmatpush1.msra.mxu0 0.0
        %362 = vmatprep.subr.mxu0 0.0
        %363 = vmatpush1.msra.mxu0 0.0
        %364 = vmatprep.subr.mxu0 0.0
        %365 = vmatpush1.msra.mxu0 0.0
        %366 = vmatprep.subr.mxu0 0.0
        %367 = vmatpush1.msra.mxu0 0.0
        %368 = vmatprep.subr.mxu0 0.0
        %369 = vmatpush1.msra.mxu0 0.0
        %370 = vmatprep.subr.mxu0 0.0
        %371 = vmatpush1.msra.mxu0 0.0
        %372 = vmatprep.subr.mxu0 0.0
        %373 = vmatpush1.msra.mxu0 0.0
        %374 = vmatprep.subr.mxu0 0.0
        %375 = vmatpush1.msra.mxu0 0.0
        %376 = vmatprep.subr.mxu0 0.0
        %377 = vmatpush1.msra.mxu0 0.0
        %378 = vmatprep.subr.mxu0 0.0
        %379 = vmatpush1.msra.mxu0 0.0
        %380 = vmatprep.subr.mxu0 0.0
        %381 = vmatpush1.msra.mxu0 0.0
        %382 = vmatprep.subr.mxu0 0.0
        %383 = vmatpush1.msra.mxu0 0.0
        %384 = vmatprep.subr.mxu0 0.0
        %385 = vmatpush1.msra.mxu0 0.0
        %386 = vmatprep.subr.mxu0 0.0
        %387 = vmatpush1.msra.mxu0 0.0
        %388 = vmatprep.subr.mxu0 0.0
        %389 = vmatpush1.msra.mxu0 0.0
        %390 = vmatprep.subr.mxu0 0.0
        %391 = vmatpush1.msra.mxu0 0.0
        %392 = vmatprep.subr.mxu0 0.0
        %393 = vmatpush1.msra.mxu0 0.0
        %394 = vmatprep.subr.mxu0 0.0
        %395 = vmatpush1.msra.mxu0 0.0
        %396 = vmatprep.subr.mxu0 0.0
        %397 = vmatpush1.msra.mxu0 0.0
        %398 = vmatprep.subr.mxu0 0.0
        %399 = vmatpush1.msra.mxu0 0.0
        %400 = vmatprep.subr.mxu0 0.0
        %401 = vmatpush1.msra.mxu0 0.0
        %402 = vmatprep.subr.mxu0 0.0
        %403 = vmatpush1.msra.mxu0 0.0
        %404 = vmatprep.subr.mxu0 0.0
        %405 = vmatpush1.msra.mxu0 0.0
        %406 = vmatprep.subr.mxu0 0.0
        %407 = vmatpush1.msra.mxu0 0.0
        %408 = vmatprep.subr.mxu0 0.0
        %409 = vmatpush1.msra.mxu0 0.0
        %410 = vmatprep.subr.mxu0 0.0
        %411 = vmatpush1.msra.mxu0 0.0
        %412 = vmatprep.mubr.f32.mxu0 0.0
        %413 = vmatmul.mubr.f32.gmra.mrb[0].mxu0 %v346
        %v414 = vpop.f32.mrb[0].mxu0
        %v415 = vadd.f32 0.0, %v414
        %v416 = vpop.f32.mrb[0].mxu0
        %417 = vdwg.mxu0
        %v418 = vtanh.pop %v415
        %v419 = vld [vmem:[#allocation5] sm:$0xff]
        %v420 = vld [vmem:[#allocation5 + $0x8] sm:$0xff]
        %v421 = vld [vmem:[#allocation5 + $0x10] sm:$0xff]
        %v422 = vld [vmem:[#allocation5 + $0x18] sm:$0xff]
        %v424 = vsel %vm345, %v338, 0
        %426 = vmatprep.subr.mxu0 0.0
        %427 = vmatpush1.msra.mxu0 %v419
        %428 = vmatprep.subr.mxu0 0.0
        %429 = vmatpush1.msra.mxu0 %v420
        %430 = vmatprep.subr.mxu0 0.0
        %431 = vmatpush1.msra.mxu0 %v421
        %432 = vmatprep.subr.mxu0 0.0
        %433 = vmatpush1.msra.mxu0 %v422
        %434 = vmatprep.subr.mxu0 0.0
        %435 = vmatpush1.msra.mxu0 0.0
        %436 = vmatprep.subr.mxu0 0.0
        %437 = vmatpush1.msra.mxu0 0.0
        %438 = vmatprep.subr.mxu0 0.0
        %439 = vmatpush1.msra.mxu0 0.0
        %440 = vmatprep.subr.mxu0 0.0
        %441 = vmatpush1.msra.mxu0 0.0
        %442 = vmatprep.subr.mxu0 0.0
        %443 = vmatpush1.msra.mxu0 0.0
        %444 = vmatprep.subr.mxu0 0.0
        %445 = vmatpush1.msra.mxu0 0.0
        %446 = vmatprep.subr.mxu0 0.0
        %447 = vmatpush1.msra.mxu0 0.0
        %448 = vmatprep.subr.mxu0 0.0
        %449 = vmatpush1.msra.mxu0 0.0
        %450 = vmatprep.subr.mxu0 0.0
        %451 = vmatpush1.msra.mxu0 0.0
        %452 = vmatprep.subr.mxu0 0.0
        %453 = vmatpush1.msra.mxu0 0.0
        %454 = vmatprep.subr.mxu0 0.0
        %455 = vmatpush1.msra.mxu0 0.0
        %456 = vmatprep.subr.mxu0 0.0
        %457 = vmatpush1.msra.mxu0 0.0
        %458 = vmatprep.subr.mxu0 0.0
        %459 = vmatpush1.msra.mxu0 0.0
        %460 = vmatprep.subr.mxu0 0.0
        %461 = vmatpush1.msra.mxu0 0.0
        %462 = vmatprep.subr.mxu0 0.0
        %463 = vmatpush1.msra.mxu0 0.0
        %464 = vmatprep.subr.mxu0 0.0
        %465 = vmatpush1.msra.mxu0 0.0
        %466 = vmatprep.subr.mxu0 0.0
        %467 = vmatpush1.msra.mxu0 0.0
        %468 = vmatprep.subr.mxu0 0.0
        %469 = vmatpush1.msra.mxu0 0.0
        %470 = vmatprep.subr.mxu0 0.0
        %471 = vmatpush1.msra.mxu0 0.0
        %472 = vmatprep.subr.mxu0 0.0
        %473 = vmatpush1.msra.mxu0 0.0
        %474 = vmatprep.subr.mxu0 0.0
        %475 = vmatpush1.msra.mxu0 0.0
        %476 = vmatprep.subr.mxu0 0.0
        %477 = vmatpush1.msra.mxu0 0.0
        %478 = vmatprep.subr.mxu0 0.0
        %479 = vmatpush1.msra.mxu0 0.0
        %480 = vmatprep.subr.mxu0 0.0
        %481 = vmatpush1.msra.mxu0 0.0
        %482 = vmatprep.subr.mxu0 0.0
        %483 = vmatpush1.msra.mxu0 0.0
        %484 = vmatprep.subr.mxu0 0.0
        %485 = vmatpush1.msra.mxu0 0.0
        %486 = vmatprep.subr.mxu0 0.0
        %487 = vmatpush1.msra.mxu0 0.0
        %488 = vmatprep.subr.mxu0 0.0
        %489 = vmatpush1.msra.mxu0 0.0
        %490 = vmatprep.mubr.f32.mxu0 0.0
        %491 = vmatmul.mubr.f32.gmra.mrb[0].mxu0 %v424
        %v492 = vpop.f32.mrb[0].mxu0
        %v493 = vadd.f32 0.0, %v492
        %v494 = vpop.f32.mrb[0].mxu0
        %495 = vdwg.mxu0
        %v496 = vtanh.pop %v493
        %v497 = vlaneseq
        %v498 = vshrl.u32 %v497, 7
        %v499 = vsub.s32 0, %v498
        %v500 = vrot.slane %v496, %v499
        %v501 = vmul.f32 %v418, %v500
        %v502 = vpack.c.bf16 %v337, %v337
        %v503 = vld [vmem:[#allocation7] sm:$0xff]
        %v504 = vld [vmem:[#allocation7 + $0x8] sm:$0xf]
        %v505 = vld [vmem:[#allocation7 + $0xc] sm:$0xff]
        %v506 = vld [vmem:[#allocation7 + $0x14] sm:$0xf]
        %v507 = vld [vmem:[#allocation7 + $0x18] sm:$0xff]
        %v508 = vld [vmem:[#allocation7 + $0x20] sm:$0xf]
        %v509 = vld [vmem:[#allocation7 + $0x24] sm:$0xff]
        %v510 = vld [vmem:[#allocation7 + $0x2c] sm:$0xf]
        %v511 = vpack.c.bf16 %v338, %v338
        %v512 = vld [vmem:[#allocation7 + $0x60] sm:$0xff]
        %v513 = vld [vmem:[#allocation7 + $0x68] sm:$0xf]
        %v514 = vld [vmem:[#allocation7 + $0x6c] sm:$0xff]
        %v515 = vld [vmem:[#allocation7 + $0x74] sm:$0xf]
        %v516 = vld [vmem:[#allocation7 + $0x78] sm:$0xff]
        %v517 = vld [vmem:[#allocation7 + $0x80] sm:$0xf]
        %v518 = vld [vmem:[#allocation7 + $0x84] sm:$0xff]
        %v519 = vld [vmem:[#allocation7 + $0x8c] sm:$0xf]
        %v528 = vunpack.c.l.b16 %v512
        %v529 = vunpack.c.h.b16 %v512
        %v530 = vunpack.c.l.b16 %v513
        %v531 = vunpack.c.l.b16 %v514
        %v532 = vunpack.c.h.b16 %v514
        %v533 = vunpack.c.l.b16 %v515
        %v534 = vunpack.c.l.b16 %v516
        %v535 = vunpack.c.h.b16 %v516
        %v536 = vunpack.c.l.b16 %v517
        %v537 = vunpack.c.l.b16 %v518
        %v538 = vunpack.c.h.b16 %v518
        %v539 = vunpack.c.l.b16 %v519
        %v540 = vpack.c.b16 %v531, %v528
        %v541 = vpack.c.b16 %v532, %v529
        %v542 = vpack.c.b16 %v533, %v530
        %v543 = vpack.c.b16 %v537, %v534
        %v544 = vpack.c.b16 %v538, %v535
        %v545 = vpack.c.b16 %v539, %v536
        %v553 = vsel %vm345, %v511, 0
        %555 = vmatprep.subr.bf16.mxu0 %v541
        %556 = vmatpush1.bf16.msra.mxu0 %v540
        %557 = vmatprep.subr.bf16.mxu0 %v544
        %558 = vmatpush1.bf16.msra.mxu0 %v543
        %559 = vmatprep.subr.bf16.mxu0 0
        %560 = vmatpush1.bf16.msra.mxu0 0
        %561 = vmatprep.subr.bf16.mxu0 0
        %562 = vmatpush1.bf16.msra.mxu0 0
        %563 = vmatprep.subr.bf16.mxu0 0
        %564 = vmatpush1.bf16.msra.mxu0 0
        %565 = vmatprep.subr.bf16.mxu0 0
        %566 = vmatpush1.bf16.msra.mxu0 0
        %567 = vmatprep.subr.bf16.mxu0 0
        %568 = vmatpush1.bf16.msra.mxu0 0
        %569 = vmatprep.subr.bf16.mxu0 0
        %570 = vmatpush1.bf16.msra.mxu0 0
        %571 = vmatprep.subr.bf16.mxu0 0
        %572 = vmatpush1.bf16.msra.mxu0 0
        %573 = vmatprep.subr.bf16.mxu0 0
        %574 = vmatpush1.bf16.msra.mxu0 0
        %575 = vmatprep.subr.bf16.mxu0 0
        %576 = vmatpush1.bf16.msra.mxu0 0
        %577 = vmatprep.subr.bf16.mxu0 0
        %578 = vmatpush1.bf16.msra.mxu0 0
        %579 = vmatprep.subr.bf16.mxu0 0
        %580 = vmatpush1.bf16.msra.mxu0 0
        %581 = vmatprep.subr.bf16.mxu0 0
        %582 = vmatpush1.bf16.msra.mxu0 0
        %583 = vmatprep.subr.bf16.mxu0 0
        %584 = vmatpush1.bf16.msra.mxu0 0
        %585 = vmatprep.subr.bf16.mxu0 0
        %586 = vmatpush1.bf16.msra.mxu0 0
        %587 = vmatprep.mubr.bf16.mxu0 0
        %588 = vmatmul.mubr.bf16.gmra.mrb[0].mxu0 %v553
        %v589 = vpop.f32.mrb[0].mxu0
        %v590 = vadd.f32 0.0, %v589
        %v591 = vpop.f32.mrb[0].mxu0
        %v592 = vadd.f32 0.0, %v591
        %v593 = vpop.f32.mrb[0].mxu0
        %v594 = vpop.f32.mrb[0].mxu0
        %595 = vdwg.mxu0
        %596 = vmatprep.subr.bf16.mxu0 0
        %597 = vmatpush1.bf16.msra.mxu0 %v542
        %598 = vmatprep.subr.bf16.mxu0 0
        %599 = vmatpush1.bf16.msra.mxu0 %v545
        %600 = vmatprep.subr.bf16.mxu0 0
        %601 = vmatpush1.bf16.msra.mxu0 0
        %602 = vmatprep.subr.bf16.mxu0 0
        %603 = vmatpush1.bf16.msra.mxu0 0
        %604 = vmatprep.subr.bf16.mxu0 0
        %605 = vmatpush1.bf16.msra.mxu0 0
        %606 = vmatprep.subr.bf16.mxu0 0
        %607 = vmatpush1.bf16.msra.mxu0 0
        %608 = vmatprep.subr.bf16.mxu0 0
        %609 = vmatpush1.bf16.msra.mxu0 0
        %610 = vmatprep.subr.bf16.mxu0 0
        %611 = vmatpush1.bf16.msra.mxu0 0
        %612 = vmatprep.subr.bf16.mxu0 0
        %613 = vmatpush1.bf16.msra.mxu0 0
        %614 = vmatprep.subr.bf16.mxu0 0
        %615 = vmatpush1.bf16.msra.mxu0 0
        %616 = vmatprep.subr.bf16.mxu0 0
        %617 = vmatpush1.bf16.msra.mxu0 0
        %618 = vmatprep.subr.bf16.mxu0 0
        %619 = vmatpush1.bf16.msra.mxu0 0
        %620 = vmatprep.subr.bf16.mxu0 0
        %621 = vmatpush1.bf16.msra.mxu0 0
        %622 = vmatprep.subr.bf16.mxu0 0
        %623 = vmatpush1.bf16.msra.mxu0 0
        %624 = vmatprep.subr.bf16.mxu0 0
        %625 = vmatpush1.bf16.msra.mxu0 0
        %626 = vmatprep.subr.bf16.mxu0 0
        %627 = vmatpush1.bf16.msra.mxu0 0
        %628 = vmatprep.mubr.bf16.mxu0 0
        %629 = vmatmul.mubr.bf16.gmra.mrb[0].mxu0 %v553
        %v630 = vpop.f32.mrb[0].mxu0
        %v631 = vadd.f32 0.0, %v630
        %v632 = vpop.f32.mrb[0].mxu0
        %v633 = vpop.f32.mrb[0].mxu0
        %v634 = vpop.f32.mrb[0].mxu0
        %635 = vdwg.mxu0
        %v644 = vunpack.c.l.b16 %v503
        %v645 = vunpack.c.h.b16 %v503
        %v646 = vunpack.c.l.b16 %v504
        %v647 = vunpack.c.l.b16 %v505
        %v648 = vunpack.c.h.b16 %v505
        %v649 = vunpack.c.l.b16 %v506
        %v650 = vunpack.c.l.b16 %v507
        %v651 = vunpack.c.h.b16 %v507
        %v652 = vunpack.c.l.b16 %v508
        %v653 = vunpack.c.l.b16 %v509
        %v654 = vunpack.c.h.b16 %v509
        %v655 = vunpack.c.l.b16 %v510
        %v656 = vpack.c.b16 %v647, %v644
        %v657 = vpack.c.b16 %v648, %v645
        %v658 = vpack.c.b16 %v649, %v646
        %v659 = vpack.c.b16 %v653, %v650
        %v660 = vpack.c.b16 %v654, %v651
        %v661 = vpack.c.b16 %v655, %v652
        %v669 = vsel %vm345, %v502, 0
        %671 = vmatprep.subr.bf16.mxu0 %v657
        %672 = vmatpush1.bf16.msra.mxu0 %v656
        %673 = vmatprep.subr.bf16.mxu0 %v660
        %674 = vmatpush1.bf16.msra.mxu0 %v659
        %675 = vmatprep.subr.bf16.mxu0 0
        %676 = vmatpush1.bf16.msra.mxu0 0
        %677 = vmatprep.subr.bf16.mxu0 0
        %678 = vmatpush1.bf16.msra.mxu0 0
        %679 = vmatprep.subr.bf16.mxu0 0
        %680 = vmatpush1.bf16.msra.mxu0 0
        %681 = vmatprep.subr.bf16.mxu0 0
        %682 = vmatpush1.bf16.msra.mxu0 0
        %683 = vmatprep.subr.bf16.mxu0 0
        %684 = vmatpush1.bf16.msra.mxu0 0
        %685 = vmatprep.subr.bf16.mxu0 0
        %686 = vmatpush1.bf16.msra.mxu0 0
        %687 = vmatprep.subr.bf16.mxu0 0
        %688 = vmatpush1.bf16.msra.mxu0 0
        %689 = vmatprep.subr.bf16.mxu0 0
        %690 = vmatpush1.bf16.msra.mxu0 0
        %691 = vmatprep.subr.bf16.mxu0 0
        %692 = vmatpush1.bf16.msra.mxu0 0
        %693 = vmatprep.subr.bf16.mxu0 0
        %694 = vmatpush1.bf16.msra.mxu0 0
        %695 = vmatprep.subr.bf16.mxu0 0
        %696 = vmatpush1.bf16.msra.mxu0 0
        %697 = vmatprep.subr.bf16.mxu0 0
        %698 = vmatpush1.bf16.msra.mxu0 0
        %699 = vmatprep.subr.bf16.mxu0 0
        %700 = vmatpush1.bf16.msra.mxu0 0
        %701 = vmatprep.subr.bf16.mxu0 0
        %702 = vmatpush1.bf16.msra.mxu0 0
        %703 = vmatprep.mubr.bf16.mxu0 0
        %704 = vmatmul.mubr.bf16.gmra.mrb[0].mxu0 %v669
        %v705 = vpop.f32.mrb[0].mxu0
        %v706 = vadd.f32 %v590, %v705
        %v707 = vpop.f32.mrb[0].mxu0
        %v708 = vadd.f32 %v592, %v707
        %v709 = vpop.f32.mrb[0].mxu0
        %v710 = vpop.f32.mrb[0].mxu0
        %711 = vdwg.mxu0
        %712 = vmatprep.subr.bf16.mxu0 0
        %713 = vmatpush1.bf16.msra.mxu0 %v658
        %714 = vmatprep.subr.bf16.mxu0 0
        %715 = vmatpush1.bf16.msra.mxu0 %v661
        %716 = vmatprep.subr.bf16.mxu0 0
        %717 = vmatpush1.bf16.msra.mxu0 0
        %718 = vmatprep.subr.bf16.mxu0 0
        %719 = vmatpush1.bf16.msra.mxu0 0
        %720 = vmatprep.subr.bf16.mxu0 0
        %721 = vmatpush1.bf16.msra.mxu0 0
        %722 = vmatprep.subr.bf16.mxu0 0
        %723 = vmatpush1.bf16.msra.mxu0 0
        %724 = vmatprep.subr.bf16.mxu0 0
        %725 = vmatpush1.bf16.msra.mxu0 0
        %726 = vmatprep.subr.bf16.mxu0 0
        %727 = vmatpush1.bf16.msra.mxu0 0
        %728 = vmatprep.subr.bf16.mxu0 0
        %729 = vmatpush1.bf16.msra.mxu0 0
        %730 = vmatprep.subr.bf16.mxu0 0
        %731 = vmatpush1.bf16.msra.mxu0 0
        %732 = vmatprep.subr.bf16.mxu0 0
        %733 = vmatpush1.bf16.msra.mxu0 0
        %734 = vmatprep.subr.bf16.mxu0 0
        %735 = vmatpush1.bf16.msra.mxu0 0
        %736 = vmatprep.subr.bf16.mxu0 0
        %737 = vmatpush1.bf16.msra.mxu0 0
        %738 = vmatprep.subr.bf16.mxu0 0
        %739 = vmatpush1.bf16.msra.mxu0 0
        %740 = vmatprep.subr.bf16.mxu0 0
        %741 = vmatpush1.bf16.msra.mxu0 0
        %742 = vmatprep.subr.bf16.mxu0 0
        %743 = vmatpush1.bf16.msra.mxu0 0
        %744 = vmatprep.mubr.bf16.mxu0 0
        %745 = vmatmul.mubr.bf16.gmra.mrb[0].mxu0 %v669
        %v746 = vpop.f32.mrb[0].mxu0
        %v747 = vadd.f32 %v631, %v746
        %v748 = vpop.f32.mrb[0].mxu0
        %v749 = vpop.f32.mrb[0].mxu0
        %v750 = vpop.f32.mrb[0].mxu0
        %751 = vdwg.mxu0
        %v752 = vld [vmem:[#allocation7 + $0x30] sm:$0xff]
        %v753 = vld [vmem:[#allocation7 + $0x38] sm:$0xf]
        %v754 = vld [vmem:[#allocation7 + $0x3c] sm:$0xff]
        %v755 = vld [vmem:[#allocation7 + $0x44] sm:$0xf]
        %v756 = vld [vmem:[#allocation7 + $0x48] sm:$0xff]
        %v757 = vld [vmem:[#allocation7 + $0x50] sm:$0xf]
        %v758 = vld [vmem:[#allocation7 + $0x54] sm:$0xff]
        %v759 = vld [vmem:[#allocation7 + $0x5c] sm:$0xf]
        %v760 = vpack.c.bf16 %v501, %v501
        %v761 = vld [vmem:[#allocation7 + $0x90] sm:$0xff]
        %v762 = vld [vmem:[#allocation7 + $0x98] sm:$0xf]
        %v763 = vld [vmem:[#allocation7 + $0x9c] sm:$0xff]
        %v764 = vld [vmem:[#allocation7 + $0xa4] sm:$0xf]
        %v765 = vld [vmem:[#allocation7 + $0xa8] sm:$0xff]
        %v766 = vld [vmem:[#allocation7 + $0xb0] sm:$0xf]
        %v767 = vld [vmem:[#allocation7 + $0xb4] sm:$0xff]
        %v768 = vld [vmem:[#allocation7 + $0xbc] sm:$0xf]
        %v777 = vunpack.c.l.b16 %v761
        %v778 = vunpack.c.h.b16 %v761
        %v779 = vunpack.c.l.b16 %v762
        %v780 = vunpack.c.l.b16 %v763
        %v781 = vunpack.c.h.b16 %v763
        %v782 = vunpack.c.l.b16 %v764
        %v783 = vunpack.c.l.b16 %v765
        %v784 = vunpack.c.h.b16 %v765
        %v785 = vunpack.c.l.b16 %v766
        %v786 = vunpack.c.l.b16 %v767
        %v787 = vunpack.c.h.b16 %v767
        %v788 = vunpack.c.l.b16 %v768
        %v789 = vpack.c.b16 %v780, %v777
        %v790 = vpack.c.b16 %v781, %v778
        %v791 = vpack.c.b16 %v782, %v779
        %v792 = vpack.c.b16 %v786, %v783
        %v793 = vpack.c.b16 %v787, %v784
        %v794 = vpack.c.b16 %v788, %v785
        %v802 = vsel %vm345, %v760, 0
        %804 = vmatprep.subr.bf16.mxu0 %v790
        %805 = vmatpush1.bf16.msra.mxu0 %v789
        %806 = vmatprep.subr.bf16.mxu0 %v793
        %807 = vmatpush1.bf16.msra.mxu0 %v792
        %808 = vmatprep.subr.bf16.mxu0 0
        %809 = vmatpush1.bf16.msra.mxu0 0
        %810 = vmatprep.subr.bf16.mxu0 0
        %811 = vmatpush1.bf16.msra.mxu0 0
        %812 = vmatprep.subr.bf16.mxu0 0
        %813 = vmatpush1.bf16.msra.mxu0 0
        %814 = vmatprep.subr.bf16.mxu0 0
        %815 = vmatpush1.bf16.msra.mxu0 0
        %816 = vmatprep.subr.bf16.mxu0 0
        %817 = vmatpush1.bf16.msra.mxu0 0
        %818 = vmatprep.subr.bf16.mxu0 0
        %819 = vmatpush1.bf16.msra.mxu0 0
        %820 = vmatprep.subr.bf16.mxu0 0
        %821 = vmatpush1.bf16.msra.mxu0 0
        %822 = vmatprep.subr.bf16.mxu0 0
        %823 = vmatpush1.bf16.msra.mxu0 0
        %824 = vmatprep.subr.bf16.mxu0 0
        %825 = vmatpush1.bf16.msra.mxu0 0
        %826 = vmatprep.subr.bf16.mxu0 0
        %827 = vmatpush1.bf16.msra.mxu0 0
        %828 = vmatprep.subr.bf16.mxu0 0
        %829 = vmatpush1.bf16.msra.mxu0 0
        %830 = vmatprep.subr.bf16.mxu0 0
        %831 = vmatpush1.bf16.msra.mxu0 0
        %832 = vmatprep.subr.bf16.mxu0 0
        %833 = vmatpush1.bf16.msra.mxu0 0
        %834 = vmatprep.subr.bf16.mxu0 0
        %835 = vmatpush1.bf16.msra.mxu0 0
        %836 = vmatprep.mubr.bf16.mxu0 0
        %837 = vmatmul.mubr.bf16.gmra.mrb[0].mxu0 %v802
        %v838 = vpop.f32.mrb[0].mxu0
        %v839 = vadd.f32 0.0, %v838
        %v840 = vpop.f32.mrb[0].mxu0
        %v841 = vadd.f32 0.0, %v840
        %v842 = vpop.f32.mrb[0].mxu0
        %v843 = vpop.f32.mrb[0].mxu0
        %844 = vdwg.mxu0
        %845 = vmatprep.subr.bf16.mxu0 0
        %846 = vmatpush1.bf16.msra.mxu0 %v791
        %847 = vmatprep.subr.bf16.mxu0 0
        %848 = vmatpush1.bf16.msra.mxu0 %v794
        %849 = vmatprep.subr.bf16.mxu0 0
        %850 = vmatpush1.bf16.msra.mxu0 0
        %851 = vmatprep.subr.bf16.mxu0 0
        %852 = vmatpush1.bf16.msra.mxu0 0
        %853 = vmatprep.subr.bf16.mxu0 0
        %854 = vmatpush1.bf16.msra.mxu0 0
        %855 = vmatprep.subr.bf16.mxu0 0
        %856 = vmatpush1.bf16.msra.mxu0 0
        %857 = vmatprep.subr.bf16.mxu0 0
        %858 = vmatpush1.bf16.msra.mxu0 0
        %859 = vmatprep.subr.bf16.mxu0 0
        %860 = vmatpush1.bf16.msra.mxu0 0
        %861 = vmatprep.subr.bf16.mxu0 0
        %862 = vmatpush1.bf16.msra.mxu0 0
        %863 = vmatprep.subr.bf16.mxu0 0
        %864 = vmatpush1.bf16.msra.mxu0 0
        %865 = vmatprep.subr.bf16.mxu0 0
        %866 = vmatpush1.bf16.msra.mxu0 0
        %867 = vmatprep.subr.bf16.mxu0 0
        %868 = vmatpush1.bf16.msra.mxu0 0
        %869 = vmatprep.subr.bf16.mxu0 0
        %870 = vmatpush1.bf16.msra.mxu0 0
        %871 = vmatprep.subr.bf16.mxu0 0
        %872 = vmatpush1.bf16.msra.mxu0 0
        %873 = vmatprep.subr.bf16.mxu0 0
        %874 = vmatpush1.bf16.msra.mxu0 0
        %875 = vmatprep.subr.bf16.mxu0 0
        %876 = vmatpush1.bf16.msra.mxu0 0
        %877 = vmatprep.mubr.bf16.mxu0 0
        %878 = vmatmul.mubr.bf16.gmra.mrb[0].mxu0 %v802
        %v879 = vpop.f32.mrb[0].mxu0
        %v880 = vadd.f32 0.0, %v879
        %v881 = vpop.f32.mrb[0].mxu0
        %v882 = vpop.f32.mrb[0].mxu0
        %v883 = vpop.f32.mrb[0].mxu0
        %884 = vdwg.mxu0
        %v885 = vshrl.u32 %v502, 16
        %v887 = vshll.u32 %v502, 16
        %v889 = vrot.slane %v887, 1
        %v890 = vor.u32 %v885, %v889
        %v899 = vunpack.c.l.b16 %v752
        %v900 = vunpack.c.h.b16 %v752
        %v901 = vunpack.c.l.b16 %v753
        %v902 = vunpack.c.l.b16 %v754
        %v903 = vunpack.c.h.b16 %v754
        %v904 = vunpack.c.l.b16 %v755
        %v905 = vunpack.c.l.b16 %v756
        %v906 = vunpack.c.h.b16 %v756
        %v907 = vunpack.c.l.b16 %v757
        %v908 = vunpack.c.l.b16 %v758
        %v909 = vunpack.c.h.b16 %v758
        %v910 = vunpack.c.l.b16 %v759
        %v911 = vpack.c.b16 %v902, %v899
        %v912 = vpack.c.b16 %v903, %v900
        %v913 = vpack.c.b16 %v904, %v901
        %v914 = vpack.c.b16 %v908, %v905
        %v915 = vpack.c.b16 %v909, %v906
        %v916 = vpack.c.b16 %v910, %v907
        %v924 = vsel %vm345, %v890, 0
        %926 = vmatprep.subr.bf16.mxu0 %v912
        %927 = vmatpush1.bf16.msra.mxu0 %v911
        %928 = vmatprep.subr.bf16.mxu0 %v915
        %929 = vmatpush1.bf16.msra.mxu0 %v914
        %930 = vmatprep.subr.bf16.mxu0 0
        %931 = vmatpush1.bf16.msra.mxu0 0
        %932 = vmatprep.subr.bf16.mxu0 0
        %933 = vmatpush1.bf16.msra.mxu0 0
        %934 = vmatprep.subr.bf16.mxu0 0
        %935 = vmatpush1.bf16.msra.mxu0 0
        %936 = vmatprep.subr.bf16.mxu0 0
        %937 = vmatpush1.bf16.msra.mxu0 0
        %938 = vmatprep.subr.bf16.mxu0 0
        %939 = vmatpush1.bf16.msra.mxu0 0
        %940 = vmatprep.subr.bf16.mxu0 0
        %941 = vmatpush1.bf16.msra.mxu0 0
        %942 = vmatprep.subr.bf16.mxu0 0
        %943 = vmatpush1.bf16.msra.mxu0 0
        %944 = vmatprep.subr.bf16.mxu0 0
        %945 = vmatpush1.bf16.msra.mxu0 0
        %946 = vmatprep.subr.bf16.mxu0 0
        %947 = vmatpush1.bf16.msra.mxu0 0
        %948 = vmatprep.subr.bf16.mxu0 0
        %949 = vmatpush1.bf16.msra.mxu0 0
        %950 = vmatprep.subr.bf16.mxu0 0
        %951 = vmatpush1.bf16.msra.mxu0 0
        %952 = vmatprep.subr.bf16.mxu0 0
        %953 = vmatpush1.bf16.msra.mxu0 0
        %954 = vmatprep.subr.bf16.mxu0 0
        %955 = vmatpush1.bf16.msra.mxu0 0
        %956 = vmatprep.subr.bf16.mxu0 0
        %957 = vmatpush1.bf16.msra.mxu0 0
        %958 = vmatprep.mubr.bf16.mxu0 0
        %959 = vmatmul.mubr.bf16.gmra.mrb[0].mxu0 %v924
        %v960 = vpop.f32.mrb[0].mxu0
        %v961 = vadd.f32 %v839, %v960
        %v962 = vpop.f32.mrb[0].mxu0
        %v963 = vadd.f32 %v841, %v962
        %v964 = vpop.f32.mrb[0].mxu0
        %v965 = vpop.f32.mrb[0].mxu0
        %966 = vdwg.mxu0
        %967 = vmatprep.subr.bf16.mxu0 0
        %968 = vmatpush1.bf16.msra.mxu0 %v913
        %969 = vmatprep.subr.bf16.mxu0 0
        %970 = vmatpush1.bf16.msra.mxu0 %v916
        %971 = vmatprep.subr.bf16.mxu0 0
        %972 = vmatpush1.bf16.msra.mxu0 0
        %973 = vmatprep.subr.bf16.mxu0 0
        %974 = vmatpush1.bf16.msra.mxu0 0
        %975 = vmatprep.subr.bf16.mxu0 0
        %976 = vmatpush1.bf16.msra.mxu0 0
        %977 = vmatprep.subr.bf16.mxu0 0
        %978 = vmatpush1.bf16.msra.mxu0 0
        %979 = vmatprep.subr.bf16.mxu0 0
        %980 = vmatpush1.bf16.msra.mxu0 0
        %981 = vmatprep.subr.bf16.mxu0 0
        %982 = vmatpush1.bf16.msra.mxu0 0
        %983 = vmatprep.subr.bf16.mxu0 0
        %984 = vmatpush1.bf16.msra.mxu0 0
        %985 = vmatprep.subr.bf16.mxu0 0
        %986 = vmatpush1.bf16.msra.mxu0 0
        %987 = vmatprep.subr.bf16.mxu0 0
        %988 = vmatpush1.bf16.msra.mxu0 0
        %989 = vmatprep.subr.bf16.mxu0 0
        %990 = vmatpush1.bf16.msra.mxu0 0
        %991 = vmatprep.subr.bf16.mxu0 0
        %992 = vmatpush1.bf16.msra.mxu0 0
        %993 = vmatprep.subr.bf16.mxu0 0
        %994 = vmatpush1.bf16.msra.mxu0 0
        %995 = vmatprep.subr.bf16.mxu0 0
        %996 = vmatpush1.bf16.msra.mxu0 0
        %997 = vmatprep.subr.bf16.mxu0 0
        %998 = vmatpush1.bf16.msra.mxu0 0
        %999 = vmatprep.mubr.bf16.mxu0 0
        %1000 = vmatmul.mubr.bf16.gmra.mrb[0].mxu0 %v924
        %v1001 = vpop.f32.mrb[0].mxu0
        %v1002 = vadd.f32 %v880, %v1001
        %v1003 = vpop.f32.mrb[0].mxu0
        %v1004 = vpop.f32.mrb[0].mxu0
        %v1005 = vpop.f32.mrb[0].mxu0
        %1006 = vdwg.mxu0
        %v1007 = vlaneseq
        %v1008 = vshrl.u32 %v1007, 7
        %v1009 = vsub.s32 0, %v1008
        %v1010 = vrot.slane %v706, %v1009
        %v1011 = vlaneseq
        %v1012 = vshrl.u32 %v1011, 7
        %v1013 = vsub.s32 0, %v1012
        %v1014 = vrot.slane %v708, %v1013
        %v1015 = vlaneseq
        %v1016 = vshrl.u32 %v1015, 7
        %v1017 = vsub.s32 0, %v1016
        %v1018 = vrot.slane %v747, %v1017
        %v1019 = vadd.f32 %v1010, %v961
        %v1020 = vadd.f32 %v1014, %v963
        %v1021 = vadd.f32 %v1018, %v1002
        %v1022 = vld [vmem:[%s5] sm:$0x7]
        %v1024 = vlaneseq
        %v1025 = vshrl.u32 %v1024, 7
        %v1026 = vsub.s32 0, %v1025
        %v1027 = vrot.slane %v1022, %v1026
        %v1028 = vlaneseq
        %v1029 = vshrl.u32 %v1028, 7
        %v1030 = vsub.s32 1, %v1029
        %v1031 = vrot.slane %v1022, %v1030
        %v1032 = vlaneseq
        %v1033 = vshrl.u32 %v1032, 7
        %v1034 = vsub.s32 2, %v1033
        %v1035 = vrot.slane %v1022, %v1034
        %v1039 = vadd.f32 %v1019, %v1027
        %v1040 = vadd.f32 %v1020, %v1031
        %v1041 = vadd.f32 %v1021, %v1035
        %v1042 = vmax.f32 %v1039, 0.0
        %v1043 = vmax.f32 %v1040, 0.0
        %v1044 = vmax.f32 %v1041, 0.0
        %v1045 = vld [vmem:[%s6] sm:$0x7]
        %v1047 = vlaneseq
        %v1048 = vshrl.u32 %v1047, 7
        %v1049 = vsub.s32 0, %v1048
        %v1050 = vrot.slane %v1045, %v1049
        %v1051 = vlaneseq
        %v1052 = vshrl.u32 %v1051, 7
        %v1053 = vsub.s32 1, %v1052
        %v1054 = vrot.slane %v1045, %v1053
        %v1055 = vlaneseq
        %v1056 = vshrl.u32 %v1055, 7
        %v1057 = vsub.s32 2, %v1056
        %v1058 = vrot.slane %v1045, %v1057
        %v1062 = vmul.f32 %v1042, %v1050
        %v1063 = vmul.f32 %v1043, %v1054
        %v1064 = vmul.f32 %v1044, %v1058
        %vm1065 = vcmask 1043456
        %v1066 = vsel %vm1065, %v1062, 0.0
        %v1067 = vsel %vm1065, %v1063, 0.0
        %v1068 = vadd.f32 %v1066, %v1067
        %v1069 = vsel %vm1065, %v1064, 0.0
        %v1070 = vadd.f32 %v1068, %v1069
        %1071 = vadd.xlane.f32.xlu0 %v1070
        %v1072 = vpop.xlane.xlu0 %1071
        %v1073 = vmax.f32 %v1072, 0.0
        %v1075 = vlaneseq
        %v1076 = vand.u32 %v1075, 127
        %v1077 = vlaneseq
        %v1078 = vshrl.u32 %v1077, 7
        %v1079 = vsub.s32 %v1076, %v1078
        %v1080 = vrot.slane %v1073, %v1079
        %vm1082 = vcmask 24576
        %1083 = vst.msk [vmem:[%s331] sm:$0x1] %vm1082, %v1080
        %s1084 = sand.u32 %s190, 1
        %s1085 = scalar_lea.sflag [#allocation4], %s1084
        %s1086 = sand.u32 %s190, 1
        %s1087 = scalar_lea.vmem [#allocation8], %s1086
        // Predicated region
        $region61: #{tpu_custom_call.1} parent=47 // pred_check
          %p1088 = pneg %p200
        $region62: #{tpu_custom_call.1} parent=47 // pred_check_branch
          %1090 = sbr.rel (%p1088) target = $region64
        $region63: #{tpu_custom_call.1} parent=47 // pred_region
          %s1092 = ssub.s32 16, 16
          %1093 = vsyncadd %s1085, %s1092
          %s1094 = smul.addr %s25, 16
          %s1095 = scalar_lea.hbm %s7, %s1094
          %s1097 = sshll.u32 %s1087, 4
          %s1098 = int_to_ptr.vmem [resolvable:$true] %s1097
          %1100 = dma.vmem_to_hbm [thread:$0]  %s1098, 16, %s1095, %s1085
        $region64: #{tpu_custom_call.1} parent=47 // pred_fallthru
          _
      $region48: #{tpu_custom_call.1} parent=5 // pred_fallthru
        _
      %p1101 = scmp.le.s32.totalorder 2, %s20
      // Predicated region
      $region65: #{tpu_custom_call.1} parent=5 // pred_check
        %p1102 = pneg %p1101
      $region66: #{tpu_custom_call.1} parent=5 // pred_check_branch
        %1104 = sbr.rel (%p1102) target = $region68
      $region67: #{tpu_custom_call.1} parent=5 // pred_region
        %s1105 = ssub.s32 %s20, 2
        // Predicated region
        $region69: #{tpu_custom_call.1} parent=67 // pred_check
          %p1106 = pneg %p206
        $region70: #{tpu_custom_call.1} parent=67 // pred_check_branch
          %1108 = sbr.rel (%p1106) target = $region72
        $region71: #{tpu_custom_call.1} parent=67 // pred_region
          %s1109 = sand.u32 %s191, 1
          %s1110 = scalar_lea.sflag [#allocation4], %s1109
          %s1111 = sand.u32 %s191, 1
          %s1112 = scalar_lea.vmem [#allocation8], %s1111
          %1113 = dma.done %s1110, 16
        $region72: #{tpu_custom_call.1} parent=67 // pred_fallthru
          _
      $region68: #{tpu_custom_call.1} parent=5 // pred_fallthru
        _
    $region6: #{tpu_custom_call.1} parent=1 // loop_footer
      %s24 = sadd.s32 1, %s20
    $region7: #{tpu_custom_call.1} parent=1 // loop_footer_branch
      %19 = sbr.rel target = $region3
    $region8: #{tpu_custom_call.1} parent=1 // loop_exit
      _
    %1114 = vsyncpa [#allocation3], 1
    %s1115 = scalar_lea.sflag [#allocation3], 1
    %1116 = vsyncpa %s1115, 1
    %1117 = vsyncpa [#allocation6], 1
    %1118 = vsyncpa [#allocation4], 1
    %s1119 = scalar_lea.sflag [#allocation4], 1
    %1120 = vsyncpa %s1119, 1

</llo_original>
